<compile_context>
chip_gen: v7x
topology: tpu7x:2x2x1
jax: 0.10.0
libtpu: 0.0.40
codegen_flags: <defaults>
</compile_context>

<pallas_src>
import functools

import jax
import jax.numpy as jnp
from jax.experimental import pallas as pl
from jax.experimental.pallas import tpu as pltpu


def _round_up(x, m):
    return ((x + m - 1) // m) * m


def _vmem_budget():
    """(footprint budget, vmem_limit_bytes) sized from the chip's real VMEM."""
    cap = 64 * 2**20  # safe default (v7x per-TC VMEM)
    try:
        info = pltpu.get_tpu_info()
        cap = int(getattr(info, "vmem_capacity_bytes", cap))
    except Exception:
        pass
    if cap >= 100 * 2**20:          # v5e / v6e: 128 MiB physical
        budget = 104 * 2**20
    else:                            # v7x: 64 MiB per TensorCore
        budget = 48 * 2**20
    limit = max(32 * 2**20, min(cap - 8 * 2**20, 120 * 2**20))
    return budget, limit


def _pick_tiles(M, in_dim, out_dim, rank_p, x_bytes, ab_bytes, out_bytes,
                tm_target, budget_bytes):
    """Pick (tm, tn) whose VMEM footprint fits the budget.

    Shrink tn (split the out_dim axis) before shrinking tm, so the row tile —
    the real roofline lever for this memory-bound op — stays as large as
    possible.
    """
    sub = 8 if min(x_bytes, ab_bytes, out_bytes) >= 4 else 16
    tm = _round_up(max(1, min(tm_target, M)), sub)
    tn = out_dim
    can_split_n = (out_dim % 128 == 0)

    def footprint(tm_, tn_):
        nj = out_dim // tn_
        b_bufs = 1 if nj == 1 else 2
        return (2 * tm_ * in_dim * x_bytes           # streamed x (2-deep)
                + 2 * tm_ * tn_ * out_bytes          # streamed out (2-deep)
                + in_dim * rank_p * ab_bytes         # A resident (Buffered(1))
                + b_bufs * rank_p * tn_ * ab_bytes   # B tile(s)
                + tm_ * rank_p * ab_bytes            # xa scratch
                + tm_ * rank_p * 4 + tm_ * tn_ * 4)  # f32 MXU results

    while footprint(tm, tn) > budget_bytes:
        if can_split_n and tn % 256 == 0:
            tn //= 2                                  # split out_dim first
        elif tm > sub:
            tm = max(sub, _round_up(tm // 2, sub))    # only then shrink tm
        else:
            break
    return tm, tn


def _lora_kernel(x_ref, a_ref, b_ref, o_ref, xa_ref, *, scaling):
    # Grid = (row tiles, out_dim tiles); j (out_dim) is the innermost axis.
    # x@A is computed once per row tile (j == 0) into a persistent VMEM
    # scratch, then reused for every out_dim tile of that row tile.
    @pl.when(pl.program_id(1) == 0)
    def _():
        xa = jnp.dot(x_ref[...].astype(a_ref.dtype), a_ref[...],
                     preferred_element_type=jnp.float32)
        # Scale the small (tm, rank_p) intermediate (rank << out_dim) and cast
        # to B's dtype so the second MXU call gets matching operands.
        xa_ref[...] = (scaling * xa).astype(xa_ref.dtype)

    y = jnp.dot(xa_ref[...], b_ref[...], preferred_element_type=jnp.float32)
    o_ref[...] = y.astype(o_ref.dtype)


def lora_forward(x, A, B, alpha=16, *, tm=512, compute_dtype=None,
                 out_dtype=None):
    """x: (..., in_dim). Returns (..., out_dim) = scaling * (x @ A @ B)."""
    in_dim, rank = A.shape
    rank_b, out_dim = B.shape
    assert rank == rank_b
    scaling = float(alpha) / float(rank)

    orig_shape = x.shape
    out_dtype = x.dtype if out_dtype is None else jnp.dtype(out_dtype)
    x2d = x.reshape(-1, in_dim)          # collapse leading dims only (no copy)
    M = x2d.shape[0]

    # A/B are tiny (in_dim x rank, rank x out_dim): casting + rank-padding them
    # in the wrapper is cheap.  x is deliberately left untouched — its
    # compute_dtype cast happens per-tile inside the kernel.
    if compute_dtype is not None:
        ab_dtype = jnp.dtype(compute_dtype)
    else:
        ab_dtype = jnp.result_type(A.dtype, B.dtype)
    A = A.astype(ab_dtype)
    B = B.astype(ab_dtype)

    rank_p = _round_up(rank, 128)        # lane-dense MXU shapes; zero-padded
    if rank_p != rank:
        A = jnp.pad(A, ((0, 0), (0, rank_p - rank)))
        B = jnp.pad(B, ((0, rank_p - rank), (0, 0)))

    x_bytes = jnp.dtype(x2d.dtype).itemsize
    ab_bytes = jnp.dtype(ab_dtype).itemsize
    out_bytes = jnp.dtype(out_dtype).itemsize

    budget, vmem_limit = _vmem_budget()
    tm_eff, tn = _pick_tiles(M, in_dim, out_dim, rank_p,
                             x_bytes, ab_bytes, out_bytes, tm, budget)
    nj = out_dim // tn
    grid = (pl.cdiv(M, tm_eff), nj)      # ragged last row tile: masked writes

    # x: streamed per row tile; index independent of j so it stays VMEM-resident
    # across all out_dim tiles (no re-DMA).  Last dim = full in_dim (legal; no
    # padding pass over x).
    x_spec = pl.BlockSpec((tm_eff, in_dim), lambda i, j: (i, 0))
    # A: constant block index -> fetched once; single buffer saves VMEM.
    a_spec = pl.BlockSpec((in_dim, rank_p), lambda i, j: (0, 0),
                          pipeline_mode=pl.Buffered(1))
    if nj == 1:
        b_spec = pl.BlockSpec((rank_p, tn), lambda i, j: (0, 0),
                              pipeline_mode=pl.Buffered(1))
    else:
        b_spec = pl.BlockSpec((rank_p, tn), lambda i, j: (0, j))
    out_spec = pl.BlockSpec((tm_eff, tn), lambda i, j: (i, j))

    kernel = functools.partial(_lora_kernel, scaling=scaling)

    out = pl.pallas_call(
        kernel,
        out_shape=jax.ShapeDtypeStruct((M, out_dim), out_dtype),
        grid_spec=pltpu.PrefetchScalarGridSpec(
            num_scalar_prefetch=0,
            grid=grid,
            in_specs=[x_spec, a_spec, b_spec],
            out_specs=out_spec,
            scratch_shapes=[pltpu.VMEM((tm_eff, rank_p), ab_dtype)],
        ),
        compiler_params=pltpu.CompilerParams(
            # Row tiles are independent -> sharded across TensorCores; the
            # out_dim axis reuses the per-row scratch so it stays sequential.
            dimension_semantics=("parallel", "arbitrary"),
            vmem_limit_bytes=int(vmem_limit),
        ),
    )(x2d, A, B)

    return out.reshape(*orig_shape[:-1], out_dim)


if __name__ == "__main__":
    batch, seq, in_dim, out_dim, rank, alpha = 2, 8, 32, 32, 16, 16
    scaling = alpha / rank

    key = jax.random.PRNGKey(0)
    kx, ka, kb = jax.random.split(key, 3)

    x = jax.random.normal(kx, (batch, seq, in_dim), dtype=jnp.float32)

    # Parameters per LoRALayer.__init__: A = randn(in_dim, rank) * 0.01, B = zeros
    A = jax.random.normal(ka, (in_dim, rank), dtype=jnp.float32) * 0.01
    B = jnp.zeros((rank, out_dim), dtype=jnp.float32)

    # Zero-B path (as at init).
    y = lora_forward(x, A, B, alpha=alpha)
    jax.block_until_ready(y)
    ref = scaling * (x @ A @ B)
    assert y.shape == ref.shape
    assert jnp.allclose(y, ref, atol=1e-5), "mismatch with zero-B reference"

    # Non-zero B, f32 path.
    B_nz = jax.random.normal(kb, (rank, out_dim), dtype=jnp.float32) * 0.02
    y_nz = lora_forward(x, A, B_nz, alpha=alpha)
    jax.block_until_ready(y_nz)
    ref_nz = scaling * (x @ A @ B_nz)
    assert jnp.allclose(y_nz, ref_nz, atol=1e-5, rtol=1e-5), "mismatch (f32)"

    # bf16 MXU-input path (f32 accumulation) — the production-perf setting.
    y_bf = lora_forward(x, A, B_nz, alpha=alpha, compute_dtype=jnp.bfloat16)
    jax.block_until_ready(y_bf)
    assert jnp.allclose(y_bf, ref_nz, atol=5e-3, rtol=1e-1), "mismatch (bf16)"

    print("KERNEL_OK")
</pallas_src>

<mosaic_0001>
module attributes {stable_mosaic.version = 11 : i64} {
  func.func @_lora_kernel(%arg0: i32, %arg1: i32, %arg2: memref<16x32xf32, #tpu.memory_space<vmem>>, %arg3: memref<32x128xf32, #tpu.memory_space<vmem>>, %arg4: memref<128x32xf32, #tpu.memory_space<vmem>>, %arg5: memref<16x32xf32, #tpu.memory_space<vmem>>, %arg6: memref<16x128xf32, #tpu.memory_space<vmem>>) attributes {dimension_semantics = [#tpu.dimension_semantics<parallel>, #tpu.dimension_semantics<arbitrary>], iteration_bounds = array<i64: 1, 1>, scalar_prefetch = 0 : i64, scratch_operands = 1 : i64, tpu.core_type = #tpu.core_type<tc>, window_params = [{transform_indices = @transform_0, window_bounds = array<i64: 16, 32>}, {pipeline_mode = #tpu.pipeline_mode<synchronous>, transform_indices = @transform_1, window_bounds = array<i64: 32, 128>}, {pipeline_mode = #tpu.pipeline_mode<synchronous>, transform_indices = @transform_2, window_bounds = array<i64: 128, 32>}, {transform_indices = @transform_3, window_bounds = array<i64: 16, 32>}]} {
    %c0_i32 = arith.constant 0 : i32
    %0 = arith.cmpi eq, %arg1, %c0_i32 : i32
    %1 = arith.extui %0 : i1 to i32
    %c0_i32_0 = arith.constant 0 : i32
    %2 = arith.cmpi ne, %1, %c0_i32_0 : i32
    scf.if %2 {
      %c0_6 = arith.constant 0 : index
      %c0_7 = arith.constant 0 : index
      %7 = vector.load %arg2[%c0_6, %c0_7] : memref<16x32xf32, #tpu.memory_space<vmem>>, vector<16x32xf32>
      %c0_8 = arith.constant 0 : index
      %c0_9 = arith.constant 0 : index
      %8 = vector.load %arg3[%c0_8, %c0_9] : memref<32x128xf32, #tpu.memory_space<vmem>>, vector<32x128xf32>
      %cst_10 = arith.constant dense<0.000000e+00> : vector<16x128xf32>
      %9 = tpu.matmul %7, %8, %cst_10 {dimension_numbers = #tpu.dot_dimension_numbers<[1], [0], [0], [1], [0, 0, 1, 1], [], []>} : vector<16x32xf32>, vector<32x128xf32>, vector<16x128xf32> -> vector<16x128xf32>
      %cst_11 = arith.constant 1.000000e+00 : f32
      %10 = vector.broadcast %cst_11 : f32 to vector<16x128xf32>
      %11 = arith.mulf %10, %9 : vector<16x128xf32>
      %c0_12 = arith.constant 0 : index
      %c0_13 = arith.constant 0 : index
      %12 = vector.load %arg6[%c0_12, %c0_13] : memref<16x128xf32, #tpu.memory_space<vmem>>, vector<16x128xf32>
      tpu.vector_store %arg6[%c0_12, %c0_13], %11 {strides = array<i32>} : memref<16x128xf32, #tpu.memory_space<vmem>>, vector<16x128xf32>,
    } else {
    }
    %c0 = arith.constant 0 : index
    %c0_1 = arith.constant 0 : index
    %3 = vector.load %arg6[%c0, %c0_1] : memref<16x128xf32, #tpu.memory_space<vmem>>, vector<16x128xf32>
    %c0_2 = arith.constant 0 : index
    %c0_3 = arith.constant 0 : index
    %4 = vector.load %arg4[%c0_2, %c0_3] : memref<128x32xf32, #tpu.memory_space<vmem>>, vector<128x32xf32>
    %cst = arith.constant dense<0.000000e+00> : vector<16x32xf32>
    %5 = tpu.matmul %3, %4, %cst {dimension_numbers = #tpu.dot_dimension_numbers<[1], [0], [0], [1], [0, 0, 1, 1], [], []>} : vector<16x128xf32>, vector<128x32xf32>, vector<16x32xf32> -> vector<16x32xf32>
    %c0_4 = arith.constant 0 : index
    %c0_5 = arith.constant 0 : index
    %6 = vector.load %arg5[%c0_4, %c0_5] : memref<16x32xf32, #tpu.memory_space<vmem>>, vector<16x32xf32>
    tpu.vector_store %arg5[%c0_4, %c0_5], %5 {strides = array<i32>} : memref<16x32xf32, #tpu.memory_space<vmem>>, vector<16x32xf32>,
    return
  }
  func.func @transform_0(%arg0: i32, %arg1: i32) -> (i32, i32) {
    %c0_i32 = arith.constant 0 : i32
    %c0_i32_0 = arith.constant 0 : i32
    return %arg0, %c0_i32 : i32, i32
  }
  func.func @transform_1(%arg0: i32, %arg1: i32) -> (i32, i32) {
    %c0_i32 = arith.constant 0 : i32
    %c0_i32_0 = arith.constant 0 : i32
    %c0_i32_1 = arith.constant 0 : i32
    return %c0_i32, %c0_i32_0 : i32, i32
  }
  func.func @transform_2(%arg0: i32, %arg1: i32) -> (i32, i32) {
    %c0_i32 = arith.constant 0 : i32
    %c0_i32_0 = arith.constant 0 : i32
    %c0_i32_1 = arith.constant 0 : i32
    return %c0_i32, %c0_i32_0 : i32, i32
  }
  func.func @transform_3(%arg0: i32, %arg1: i32) -> (i32, i32) {
    %c0_i32 = arith.constant 0 : i32
    return %arg0, %arg1 : i32, i32
  }
}

</mosaic_0001>

<llo_original>
// kernel: tpu_custom_call.1
$region0: #{tpu_custom_call.1}
  #allocation0 [shape = 'u32[]', space=smem, size = 0x4, offset = 0x4, fixed_abs, tag = 'smem constant byte address 0x4 - core index']
  #allocation1 [shape = 'u32[144,128]{1,0:T(1,128)}', space=vmem, size = 0x12000, scoped, tag = 'internal scratch']
  #allocation2 [shape = 'f32[16,128]{1,0:T(8,128)}', space=vmem, size = 0x2000, scoped, tag = 'scratch operand']
  %s0 = inlined_call_operand.vmem [shape: f32[16,32], index: 0, kind: input, shape index: {}]
  %s1 = inlined_call_operand.vmem [shape: f32[32,128], index: 1, kind: input, shape index: {}]
  %s2 = inlined_call_operand.vmem [shape: f32[128,32], index: 2, kind: input, shape index: {}]
  %s3 = inlined_call_operand.hbm [shape: f32[16,32], index: 3, kind: output, shape index: {}]
  %s4 = sld [smem:[#allocation0]]
  $region26: #{tpu_custom_call.1} parent=0
    _
  %s6 = ssub.s32 1, %s4
  %s7 = scalar_select 0, %s6, %s4
  $region1: #{tpu_custom_call.1} parent=0
    #allocation3 [shape = 'u8[8192]{0}', space=vmem, size = 0x2000, scoped, tag = 'output window, operand 0, single buffered']
    #allocation4 [shape = 's32[1]{0}', space=sflag, size = 0x4, scoped, tag = 'scoped memory for tpu_custom_call.1']
    %8 = vsyncpa [#allocation4], 0
    // Predicated region
    $region2: #{tpu_custom_call.1} parent=1 // pred_check
      _
    $region3: #{tpu_custom_call.1} parent=1 // pred_check_branch
      %10 = sbr.rel (0) target = $region5
    $region4: #{tpu_custom_call.1} parent=1 // pred_region
      _
    $region5: #{tpu_custom_call.1} parent=1 // pred_fallthru
      _
    // Predicated region
    $region6: #{tpu_custom_call.1} parent=1 // pred_check
      _
    $region7: #{tpu_custom_call.1} parent=1 // pred_check_branch
      %12 = sbr.rel (0) target = $region9
    $region8: #{tpu_custom_call.1} parent=1 // pred_region
      _
    $region9: #{tpu_custom_call.1} parent=1 // pred_fallthru
      _
    // Predicated region
    $region10: #{tpu_custom_call.1} parent=1 // pred_check
      _
    $region11: #{tpu_custom_call.1} parent=1 // pred_check_branch
      %14 = sbr.rel (0) target = $region13
    $region12: #{tpu_custom_call.1} parent=1 // pred_region
      _
    $region13: #{tpu_custom_call.1} parent=1 // pred_fallthru
      _
    %p15 = scmp.eq.s32.totalorder 0, 0
    // Predicated region
    $region14: #{tpu_custom_call.1} parent=1 // pred_check
      %p16 = pneg %p15
    $region15: #{tpu_custom_call.1} parent=1 // pred_check_branch
      %18 = sbr.rel (%p16) target = $region17
    $region16: #{tpu_custom_call.1} parent=1 // pred_region
      %v19 = vld [vmem:[%s0] sm:$0xff]
      %v20 = vld [vmem:[%s0 + $0x8] sm:$0xff]
      %v21 = vld [vmem:[%s1] sm:$0xff]
      %v22 = vld [vmem:[%s1 + $0x8] sm:$0xff]
      %v23 = vld [vmem:[%s1 + $0x10] sm:$0xff]
      %v24 = vld [vmem:[%s1 + $0x18] sm:$0xff]
      %vm25 = vcmask 261120
      %v27 = vsel %vm25, %v19, 0
      %v30 = vsel %vm25, %v20, 0
      %32 = vmatprep.subr.mxu0 0.0
      %33 = vmatpush1.msra.mxu0 %v21
      %34 = vmatprep.subr.mxu0 0.0
      %35 = vmatpush1.msra.mxu0 %v22
      %36 = vmatprep.subr.mxu0 0.0
      %37 = vmatpush1.msra.mxu0 %v23
      %38 = vmatprep.subr.mxu0 0.0
      %39 = vmatpush1.msra.mxu0 %v24
      %40 = vmatprep.subr.mxu0 0.0
      %41 = vmatpush1.msra.mxu0 0.0
      %42 = vmatprep.subr.mxu0 0.0
      %43 = vmatpush1.msra.mxu0 0.0
      %44 = vmatprep.subr.mxu0 0.0
      %45 = vmatpush1.msra.mxu0 0.0
      %46 = vmatprep.subr.mxu0 0.0
      %47 = vmatpush1.msra.mxu0 0.0
      %48 = vmatprep.subr.mxu0 0.0
      %49 = vmatpush1.msra.mxu0 0.0
      %50 = vmatprep.subr.mxu0 0.0
      %51 = vmatpush1.msra.mxu0 0.0
      %52 = vmatprep.subr.mxu0 0.0
      %53 = vmatpush1.msra.mxu0 0.0
      %54 = vmatprep.subr.mxu0 0.0
      %55 = vmatpush1.msra.mxu0 0.0
      %56 = vmatprep.subr.mxu0 0.0
      %57 = vmatpush1.msra.mxu0 0.0
      %58 = vmatprep.subr.mxu0 0.0
      %59 = vmatpush1.msra.mxu0 0.0
      %60 = vmatprep.subr.mxu0 0.0
      %61 = vmatpush1.msra.mxu0 0.0
      %62 = vmatprep.subr.mxu0 0.0
      %63 = vmatpush1.msra.mxu0 0.0
      %64 = vmatprep.subr.mxu0 0.0
      %65 = vmatpush1.msra.mxu0 0.0
      %66 = vmatprep.subr.mxu0 0.0
      %67 = vmatpush1.msra.mxu0 0.0
      %68 = vmatprep.subr.mxu0 0.0
      %69 = vmatpush1.msra.mxu0 0.0
      %70 = vmatprep.subr.mxu0 0.0
      %71 = vmatpush1.msra.mxu0 0.0
      %72 = vmatprep.subr.mxu0 0.0
      %73 = vmatpush1.msra.mxu0 0.0
      %74 = vmatprep.subr.mxu0 0.0
      %75 = vmatpush1.msra.mxu0 0.0
      %76 = vmatprep.subr.mxu0 0.0
      %77 = vmatpush1.msra.mxu0 0.0
      %78 = vmatprep.subr.mxu0 0.0
      %79 = vmatpush1.msra.mxu0 0.0
      %80 = vmatprep.subr.mxu0 0.0
      %81 = vmatpush1.msra.mxu0 0.0
      %82 = vmatprep.subr.mxu0 0.0
      %83 = vmatpush1.msra.mxu0 0.0
      %84 = vmatprep.subr.mxu0 0.0
      %85 = vmatpush1.msra.mxu0 0.0
      %86 = vmatprep.subr.mxu0 0.0
      %87 = vmatpush1.msra.mxu0 0.0
      %88 = vmatprep.subr.mxu0 0.0
      %89 = vmatpush1.msra.mxu0 0.0
      %90 = vmatprep.subr.mxu0 0.0
      %91 = vmatpush1.msra.mxu0 0.0
      %92 = vmatprep.subr.mxu0 0.0
      %93 = vmatpush1.msra.mxu0 0.0
      %94 = vmatprep.subr.mxu0 0.0
      %95 = vmatpush1.msra.mxu0 0.0
      %96 = vmatprep.mubr.f32.mxu0 0.0
      %97 = vmatmul.mubr.f32.gmra.mrb[0].mxu0 %v27
      %v98 = vpop.f32.mrb[0].mxu0
      %v99 = vadd.f32 0.0, %v98
      %v100 = vpop.f32.mrb[0].mxu0
      %101 = vmatprep.mubr.f32.mxu0 0.0
      %102 = vmatmul.mubr.f32.gmra.mrb[0].mxu0 %v30
      %v103 = vpop.f32.mrb[0].mxu0
      %v104 = vadd.f32 0.0, %v103
      %v105 = vpop.f32.mrb[0].mxu0
      %106 = vdwg.mxu0
      %107 = vst [vmem:[#allocation2] sm:$0xff] %v99
      %108 = vst [vmem:[#allocation2 + $0x8] sm:$0xff] %v104
    $region17: #{tpu_custom_call.1} parent=1 // pred_fallthru
      _
    %v109 = vld [vmem:[#allocation2] sm:$0xff]
    %v110 = vld [vmem:[#allocation2 + $0x8] sm:$0xff]
    %v111 = vld [vmem:[%s2] sm:$0xff]
    %v112 = vld [vmem:[%s2 + $0x8] sm:$0xff]
    %v113 = vld [vmem:[%s2 + $0x10] sm:$0xff]
    %v114 = vld [vmem:[%s2 + $0x18] sm:$0xff]
    %v115 = vld [vmem:[%s2 + $0x20] sm:$0xff]
    %v116 = vld [vmem:[%s2 + $0x28] sm:$0xff]
    %v117 = vld [vmem:[%s2 + $0x30] sm:$0xff]
    %v118 = vld [vmem:[%s2 + $0x38] sm:$0xff]
    %v119 = vld [vmem:[%s2 + $0x40] sm:$0xff]
    %v120 = vld [vmem:[%s2 + $0x48] sm:$0xff]
    %v121 = vld [vmem:[%s2 + $0x50] sm:$0xff]
    %v122 = vld [vmem:[%s2 + $0x58] sm:$0xff]
    %v123 = vld [vmem:[%s2 + $0x60] sm:$0xff]
    %v124 = vld [vmem:[%s2 + $0x68] sm:$0xff]
    %v125 = vld [vmem:[%s2 + $0x70] sm:$0xff]
    %v126 = vld [vmem:[%s2 + $0x78] sm:$0xff]
    %127 = vmatprep.subr.mxu0 0.0
    %128 = vmatpush1.msra.mxu0 %v111
    %129 = vmatprep.subr.mxu0 0.0
    %130 = vmatpush1.msra.mxu0 %v112
    %131 = vmatprep.subr.mxu0 0.0
    %132 = vmatpush1.msra.mxu0 %v113
    %133 = vmatprep.subr.mxu0 0.0
    %134 = vmatpush1.msra.mxu0 %v114
    %135 = vmatprep.subr.mxu0 0.0
    %136 = vmatpush1.msra.mxu0 %v115
    %137 = vmatprep.subr.mxu0 0.0
    %138 = vmatpush1.msra.mxu0 %v116
    %139 = vmatprep.subr.mxu0 0.0
    %140 = vmatpush1.msra.mxu0 %v117
    %141 = vmatprep.subr.mxu0 0.0
    %142 = vmatpush1.msra.mxu0 %v118
    %143 = vmatprep.subr.mxu0 0.0
    %144 = vmatpush1.msra.mxu0 %v119
    %145 = vmatprep.subr.mxu0 0.0
    %146 = vmatpush1.msra.mxu0 %v120
    %147 = vmatprep.subr.mxu0 0.0
    %148 = vmatpush1.msra.mxu0 %v121
    %149 = vmatprep.subr.mxu0 0.0
    %150 = vmatpush1.msra.mxu0 %v122
    %151 = vmatprep.subr.mxu0 0.0
    %152 = vmatpush1.msra.mxu0 %v123
    %153 = vmatprep.subr.mxu0 0.0
    %154 = vmatpush1.msra.mxu0 %v124
    %155 = vmatprep.subr.mxu0 0.0
    %156 = vmatpush1.msra.mxu0 %v125
    %157 = vmatprep.subr.mxu0 0.0
    %158 = vmatpush1.msra.mxu0 %v126
    %159 = vmatprep.subr.mxu0 0.0
    %160 = vmatpush1.msra.mxu0 0.0
    %161 = vmatprep.subr.mxu0 0.0
    %162 = vmatpush1.msra.mxu0 0.0
    %163 = vmatprep.subr.mxu0 0.0
    %164 = vmatpush1.msra.mxu0 0.0
    %165 = vmatprep.subr.mxu0 0.0
    %166 = vmatpush1.msra.mxu0 0.0
    %167 = vmatprep.subr.mxu0 0.0
    %168 = vmatpush1.msra.mxu0 0.0
    %169 = vmatprep.subr.mxu0 0.0
    %170 = vmatpush1.msra.mxu0 0.0
    %171 = vmatprep.subr.mxu0 0.0
    %172 = vmatpush1.msra.mxu0 0.0
    %173 = vmatprep.subr.mxu0 0.0
    %174 = vmatpush1.msra.mxu0 0.0
    %175 = vmatprep.subr.mxu0 0.0
    %176 = vmatpush1.msra.mxu0 0.0
    %177 = vmatprep.subr.mxu0 0.0
    %178 = vmatpush1.msra.mxu0 0.0
    %179 = vmatprep.subr.mxu0 0.0
    %180 = vmatpush1.msra.mxu0 0.0
    %181 = vmatprep.subr.mxu0 0.0
    %182 = vmatpush1.msra.mxu0 0.0
    %183 = vmatprep.subr.mxu0 0.0
    %184 = vmatpush1.msra.mxu0 0.0
    %185 = vmatprep.subr.mxu0 0.0
    %186 = vmatpush1.msra.mxu0 0.0
    %187 = vmatprep.subr.mxu0 0.0
    %188 = vmatpush1.msra.mxu0 0.0
    %189 = vmatprep.subr.mxu0 0.0
    %190 = vmatpush1.msra.mxu0 0.0
    %191 = vmatprep.mubr.f32.mxu0 0.0
    %192 = vmatmul.mubr.f32.gmra.mrb[0].mxu0 %v109
    %v193 = vpop.f32.mrb[0].mxu0
    %v194 = vadd.f32 0.0, %v193
    %v195 = vpop.f32.mrb[0].mxu0
    %196 = vmatprep.mubr.f32.mxu0 0.0
    %197 = vmatmul.mubr.f32.gmra.mrb[0].mxu0 %v110
    %v198 = vpop.f32.mrb[0].mxu0
    %v199 = vadd.f32 0.0, %v198
    %v200 = vpop.f32.mrb[0].mxu0
    %201 = vdwg.mxu0
    %vm202 = vcmask 261120
    %203 = vst.msk [vmem:[#allocation3] sm:$0xff] %vm202, %v194
    %204 = vst.msk [vmem:[#allocation3 + $0x8] sm:$0xff] %vm202, %v199
    // Predicated region
    $region18: #{tpu_custom_call.1} parent=1 // pred_check
      _
    $region19: #{tpu_custom_call.1} parent=1 // pred_check_branch
      %206 = sbr.rel (0) target = $region21
    $region20: #{tpu_custom_call.1} parent=1 // pred_region
      %s208 = ssub.s32 256, 256
      %209 = vsyncadd [#allocation4], %s208
      %s210 = sshll.u32 [#allocation3], 4
      %s211 = int_to_ptr.vmem [resolvable:$true] %s210
      %216 = dma.vmem_to_hbm [thread:$0]  %s211, 256, %s3, [#allocation4], 128, 128, 8
    $region21: #{tpu_custom_call.1} parent=1 // pred_fallthru
      _
    // Predicated region
    $region22: #{tpu_custom_call.1} parent=1 // pred_check
      _
    $region23: #{tpu_custom_call.1} parent=1 // pred_check_branch
      %218 = sbr.rel (0) target = $region25
    $region24: #{tpu_custom_call.1} parent=1 // pred_region
      %219 = dma.done [#allocation4], 256
    $region25: #{tpu_custom_call.1} parent=1 // pred_fallthru
      _
    %220 = vsyncpa [#allocation4], 1

</llo_original>
